<compile_context>
chip_gen: v6e
topology: v6e:2x2x1
jax: 0.10.0
libtpu: 0.0.40
codegen_flags: <defaults>
</compile_context>

<pallas_src>
import functools

import jax
import jax.numpy as jnp
from jax import lax
from jax.experimental import pallas as pl
from jax.experimental.pallas import tpu as pltpu

_LANE = 128
_MIB = 1024 * 1024
_TILE_BYTES = 4 * _MIB        # per input, per pipeline buffer (f32-equivalent)
_FUSED_BYTES = 4 * _MIB       # use the fused single-pass path below this total


def _round_up(x: int, m: int) -> int:
    return (x + m - 1) // m * m


def _vmem_limit_bytes() -> int:
    """Generation-aware scoped-VMEM limit (<=48 MiB on v7x, <=96 MiB on v5e/v6e)."""
    cap = 64 * _MIB                                   # conservative fallback (v7x)
    try:
        info = pltpu.get_tpu_info()
        cap = int(getattr(info, "vmem_capacity_bytes", cap)) or cap
    except Exception:
        pass
    return min(cap * 3 // 4, 96 * _MIB)


def _default_single_core() -> bool:
    """True on single-TensorCore chips (v5e / v6e) -> accumulator variant."""
    try:
        kind = jax.devices()[0].device_kind.lower()
    except Exception:
        return False
    return any(t in kind for t in
               ("v5e", "v5 lite", "v5lite", "v6e", "v6 lite", "trillium"))


# --------------------------------------------------------------------------- #
# In-kernel helpers
# --------------------------------------------------------------------------- #
def _sublane_partial(x32):
    """(TR, L) f32 -> (8, L) partial sums. Pure VPU adds over the outer dim."""
    tr, l = x32.shape
    return jnp.sum(x32.reshape(tr // 8, 8, l), axis=0)


def _mask_rows(x, rows_total, tile_rows):
    """Zero logical rows at/after rows_total (ragged, out-of-bounds last tile)."""
    row = lax.broadcasted_iota(jnp.int32, x.shape, 0)
    limit = rows_total - pl.program_id(0) * tile_rows
    return jnp.where(row < limit, x, 0.0)


def _sign_match(yp, yt):
    # sign(yp) == sign(yt): product > 0, or both exactly zero (7 VPU ops/elem).
    # (Denormal-underflowing products are the only finite-input edge case.)
    return (((yp * yt) > 0.0) | ((yp == 0.0) & (yt == 0.0))).astype(jnp.float32)


def _sum_all(x):
    """(R, C) f32 -> (1, 1): lane reduce then sublane reduce (no rank-0 values)."""
    return jnp.sum(jnp.sum(x, axis=1, keepdims=True), axis=0, keepdims=True)


# --------------------------------------------------------------------------- #
# Kernels
# --------------------------------------------------------------------------- #
def _fused_kernel(yp_ref, yt_ref, sq_ref, match_ref, pdev_ref, tdev_ref):
    """Whole-problem kernel: one HBM read, all four statistics."""
    yp = yp_ref[...].astype(jnp.float32)
    yt = yt_ref[...].astype(jnp.float32)
    n_rows = yp.shape[0]
    diff = yp - yt
    sq_ref[...] = _sum_all(diff * diff)
    match_ref[...] = _sum_all(_sign_match(yp, yt))
    inv = 1.0 / float(n_rows)
    mean_p = jnp.sum(yp, axis=0, keepdims=True) * inv          # (1, D)
    mean_t = jnp.sum(yt, axis=0, keepdims=True) * inv
    pdev_ref[...] = _sum_all(jnp.abs(mean_p - yp))
    tdev_ref[...] = _sum_all(jnp.abs(mean_t - yt))


def _pass1_kernel(yp_ref, yt_ref, psum_ref, tsum_ref, sq_ref, match_ref, *,
                  rows_total, tile_rows, need_mask, accumulate):
    yp = yp_ref[...].astype(jnp.float32)
    yt = yt_ref[...].astype(jnp.float32)
    if need_mask:
        yp = _mask_rows(yp, rows_total, tile_rows)
        yt = _mask_rows(yt, rows_total, tile_rows)
    diff = yp - yt
    # Out-of-bounds rows were zeroed above so they count as sign matches; the
    # wrapper subtracts that static constant.
    p_part = _sublane_partial(yp)
    t_part = _sublane_partial(yt)
    s_part = _sublane_partial(diff * diff)
    m_part = _sublane_partial(_sign_match(yp, yt))
    if accumulate:                       # single-TC: one resident block / stat
        @pl.when(pl.program_id(0) == 0)
        def _():
            psum_ref[...] = jnp.zeros_like(psum_ref)
            tsum_ref[...] = jnp.zeros_like(tsum_ref)
            sq_ref[...] = jnp.zeros_like(sq_ref)
            match_ref[...] = jnp.zeros_like(match_ref)
        psum_ref[...] += p_part
        tsum_ref[...] += t_part
        sq_ref[...] += s_part
        match_ref[...] += m_part
    else:                                # megacore: per-tile partials
        psum_ref[...] = p_part
        tsum_ref[...] = t_part
        sq_ref[...] = s_part
        match_ref[...] = m_part


def _pass2_kernel(mp_ref, mt_ref, yp_ref, yt_ref, pdev_ref, tdev_ref, *,
                  rows_total, tile_rows, need_mask, accumulate):
    yp = yp_ref[...].astype(jnp.float32)
    yt = yt_ref[...].astype(jnp.float32)
    if need_mask:
        yp = _mask_rows(yp, rows_total, tile_rows)
        yt = _mask_rows(yt, rows_total, tile_rows)
    tr, l = yp.shape
    mp = mp_ref[...]                     # (8, L) replicated means (no sublane bcast)
    mt = mt_ref[...]
    p_part = jnp.sum(jnp.abs(mp - yp.reshape(tr // 8, 8, l)), axis=0)
    t_part = jnp.sum(jnp.abs(mt - yt.reshape(tr // 8, 8, l)), axis=0)
    if accumulate:
        @pl.when(pl.program_id(0) == 0)
        def _():
            pdev_ref[...] = jnp.zeros_like(pdev_ref)
            tdev_ref[...] = jnp.zeros_like(tdev_ref)
        pdev_ref[...] += p_part
        tdev_ref[...] += t_part
    else:
        pdev_ref[...] = p_part
        tdev_ref[...] = t_part


# --------------------------------------------------------------------------- #
# Wrapper
# --------------------------------------------------------------------------- #
def trend_aware_loss(y_pred: jax.Array, y_true: jax.Array, alpha: float = 0.5, *,
                     fused_vmem_bytes: int = _FUSED_BYTES,
                     single_core=None) -> jax.Array:
    """Pallas TPU implementation of TrendAwareLoss.forward. Returns a scalar."""
    assert y_pred.shape == y_true.shape and y_pred.ndim == 2
    n, d = y_pred.shape
    n_elems = n * d
    inv_elems = 1.0 / float(n_elems)
    vmem_limit = _vmem_limit_bytes()
    cparams_kw = dict(vmem_limit_bytes=vmem_limit)

    # ------------- fused single-pass fast path (one HBM read) ----------------
    if 2 * n_elems * 4 <= min(fused_vmem_bytes, vmem_limit // 6):
        full_spec = pl.BlockSpec((n, d), lambda i: (0, 0))
        out11 = jax.ShapeDtypeStruct((1, 1), jnp.float32)
        sq, match, pdev, tdev = pl.pallas_call(
            _fused_kernel,
            out_shape=(out11,) * 4,
            grid=(1,),
            in_specs=[full_spec, full_spec],
            out_specs=(pl.BlockSpec((1, 1), lambda i: (0, 0)),) * 4,
            compiler_params=pltpu.CompilerParams(
                dimension_semantics=("arbitrary",), **cparams_kw),
        )(y_pred, y_true)
        mse = sq[0, 0] * inv_elems
        trend_loss = 1.0 - match[0, 0]          # count, as in the module
        pred_div = pdev[0, 0] * inv_elems
        true_div = tdev[0, 0] * inv_elems
        diversity = jnp.abs(true_div - pred_div) ** (-0.5)
        return 10.0 * 2.0 * ((1.0 - alpha) * mse + alpha * trend_loss) + diversity

    # ------------- streaming two-pass path ------------------------------------
    if single_core is None:
        single_core = _default_single_core()
    accumulate = bool(single_core)

    # Lane-dense layout via a *free* contiguous reshape when 128 % D == 0 and
    # it divides evenly; otherwise keep (N, D) with a full-D block last dim
    # (Mosaic pads lanes in vregs — no HBM pad, no extra HBM traffic).
    yp2, yt2, r, l, g = y_pred, y_true, n, d, 1
    if d % _LANE != 0 and d < _LANE and _LANE % d == 0 and (n * d) % _LANE == 0:
        g = _LANE // d
        r = (n * d) // _LANE
        l = _LANE
        yp2 = y_pred.reshape(r, l)
        yt2 = y_true.reshape(r, l)

    # Row tile: ~4 MiB of f32 per input per buffer, >= 2 grid steps (v7x
    # megacore), balanced so the masked out-of-bounds tail is only a few rows.
    # bf16 inputs get a 16-row granule (packed (16,128) sublanes).
    itemsize = jnp.dtype(y_pred.dtype).itemsize
    sub = 8 if itemsize >= 4 else (16 if itemsize == 2 else 32)
    tile_bytes = min(_TILE_BYTES, vmem_limit // 8)
    # TODO(synk): extremely wide D (l*4 > tile_bytes) would need column tiling too.
    rows_budget = max(sub, (tile_bytes // (l * 4)) // sub * sub)
    num_tiles = max(2, pl.cdiv(r, rows_budget))
    tr = _round_up(pl.cdiv(r, num_tiles), sub)
    num_tiles = pl.cdiv(r, tr)
    need_mask = (num_tiles * tr != r)
    oob_rows = num_tiles * tr - r                     # static, masked in-kernel

    part_rows = 8 if accumulate else num_tiles * 8
    part_shape = jax.ShapeDtypeStruct((part_rows, l), jnp.float32)
    if accumulate:
        part_spec = pl.BlockSpec((8, l), lambda i: (0, 0))
        semantics = ("arbitrary",)
    else:
        part_spec = pl.BlockSpec((8, l), lambda i: (i, 0))
        semantics = ("parallel",)
    tile_spec = pl.BlockSpec((tr, l), lambda i: (i, 0))
    cparams = pltpu.CompilerParams(dimension_semantics=semantics, **cparams_kw)

    # ---- pass 1: column sums, squared error, sign-match count ---------------
    kernel1 = functools.partial(_pass1_kernel, rows_total=r, tile_rows=tr,
                                need_mask=need_mask, accumulate=accumulate)
    psum_p, tsum_p, sq_p, match_p = pl.pallas_call(
        kernel1,
        out_shape=(part_shape,) * 4,
        grid=(num_tiles,),
        in_specs=[tile_spec, tile_spec],
        out_specs=(part_spec,) * 4,
        compiler_params=cparams,
    )(yp2, yt2)

    mse = jnp.sum(sq_p) * inv_elems
    # Out-of-bounds rows are zeroed in-kernel and hence counted as matches;
    # subtract that static constant.  (Count is f32 and loses integer exactness
    # above ~2^24 elements — same as the PyTorch float32 sum.)
    trend_count = jnp.sum(match_p) - float(oob_rows * l)
    trend_loss = 1.0 - trend_count

    col_p = jnp.sum(psum_p, axis=0)                   # (L,) lane-wise sums
    col_t = jnp.sum(tsum_p, axis=0)
    inv_n = 1.0 / float(n)
    if g > 1:
        # Fold lane groups back onto the original D columns, then re-tile so
        # mean[j] is the mean of original column (j % D).
        mean_p = jnp.tile(col_p.reshape(g, d).sum(axis=0) * inv_n, g)
        mean_t = jnp.tile(col_t.reshape(g, d).sum(axis=0) * inv_n, g)
    else:
        mean_p = col_p * inv_n
        mean_t = col_t * inv_n

    # Replicate the means to (8, L) once here; the constant-index block is
    # DMA'd a single time and pass 2 needs no per-tile sublane broadcast.
    mp8 = jnp.broadcast_to(mean_p.reshape(1, l), (8, l))
    mt8 = jnp.broadcast_to(mean_t.reshape(1, l), (8, l))
    mean_spec = pl.BlockSpec((8, l), lambda i: (0, 0))

    # ---- pass 2: mean-deviation sums (diversity) -----------------------------
    kernel2 = functools.partial(_pass2_kernel, rows_total=r, tile_rows=tr,
                                need_mask=need_mask, accumulate=accumulate)
    pdev_p, tdev_p = pl.pallas_call(
        kernel2,
        out_shape=(part_shape,) * 2,
        grid=(num_tiles,),
        in_specs=[mean_spec, mean_spec, tile_spec, tile_spec],
        out_specs=(part_spec,) * 2,
        compiler_params=cparams,
    )(mp8, mt8, yp2, yt2)

    # Each masked (out-of-bounds) row contributed sum_j |mean[j]|; remove it.
    pred_div = (jnp.sum(pdev_p) - float(oob_rows) * jnp.sum(jnp.abs(mean_p))) * inv_elems
    true_div = (jnp.sum(tdev_p) - float(oob_rows) * jnp.sum(jnp.abs(mean_t))) * inv_elems
    diversity = jnp.abs(true_div - pred_div) ** (-0.5)

    return 10.0 * 2.0 * ((1.0 - alpha) * mse + alpha * trend_loss) + diversity


# --------------------------------------------------------------------------- #
# Pure-JAX reference (direct translation of the PyTorch module)
# --------------------------------------------------------------------------- #
def _ref_loss(yp, yt, alpha=0.5):
    mse = jnp.mean((yp - yt) ** 2)
    pm = jnp.mean(yp, axis=0)
    tm = jnp.mean(yt, axis=0)
    td = jnp.mean(jnp.abs(tm - yt))
    pd = jnp.mean(jnp.abs(pm - yp))
    div = jnp.abs(td - pd) ** (-0.5)
    acc = jnp.sum((jnp.sign(yp) == jnp.sign(yt)).astype(jnp.float32))
    trend_loss = 1.0 - acc
    return 10 * 2 * ((1 - alpha) * mse + alpha * trend_loss) + div


if __name__ == "__main__":
    key = jax.random.PRNGKey(0)
    # (shape, fused_limit): fused_limit=0 forces the streaming two-pass path so
    # both paths (and both streaming variants) are exercised on small data.
    cases = [
        ((8, 32), None),      # tiny: fused single-pass path
        ((64, 256), None),    # lane-dense: fused path
        ((520, 192), None),   # ragged rows + non-128 columns: fused path
        ((520, 192), 0),      # streaming: full-D lanes, masked ragged last tile
        ((512, 64), 0),       # streaming: free lane-group reshape (g=2), 2 tiles
    ]
    for shape, fused_limit in cases:
        k1, k2 = jax.random.split(jax.random.fold_in(key, shape[0] * 1000 + shape[1]))
        y_pred = jax.random.normal(k1, shape, dtype=jnp.float32)
        # Different scale keeps the diversity term well-conditioned for the check.
        y_true = 1.5 * jax.random.normal(k2, shape, dtype=jnp.float32) + 0.1
        expected = _ref_loss(y_pred, y_true, alpha=0.5)

        if fused_limit is None:
            variants = [dict()]
        else:  # exercise both the megacore-partials and accumulator variants
            variants = [dict(fused_vmem_bytes=fused_limit, single_core=False),
                        dict(fused_vmem_bytes=fused_limit, single_core=True)]
        for kwargs in variants:
            loss = trend_aware_loss(y_pred, y_true, alpha=0.5, **kwargs)
            jax.block_until_ready(loss)
            assert jnp.allclose(loss, expected, rtol=1e-4, atol=1e-4), (
                shape, kwargs, loss, expected)

    print("KERNEL_OK")
</pallas_src>

<mosaic_0001>
module attributes {stable_mosaic.version = 11 : i64} {
  func.func @_fused_kernel(%arg0: i32, %arg1: memref<8x32xf32, #tpu.memory_space<vmem>>, %arg2: memref<8x32xf32, #tpu.memory_space<vmem>>, %arg3: memref<1x1xf32, #tpu.memory_space<vmem>>, %arg4: memref<1x1xf32, #tpu.memory_space<vmem>>, %arg5: memref<1x1xf32, #tpu.memory_space<vmem>>, %arg6: memref<1x1xf32, #tpu.memory_space<vmem>>) attributes {dimension_semantics = [#tpu.dimension_semantics<arbitrary>], iteration_bounds = array<i64: 1>, scalar_prefetch = 0 : i64, scratch_operands = 0 : i64, tpu.core_type = #tpu.core_type<tc>, window_params = [{pipeline_mode = #tpu.pipeline_mode<synchronous>, transform_indices = @transform_0, window_bounds = array<i64: 8, 32>}, {pipeline_mode = #tpu.pipeline_mode<synchronous>, transform_indices = @transform_1, window_bounds = array<i64: 8, 32>}, {pipeline_mode = #tpu.pipeline_mode<synchronous>, transform_indices = @transform_2, window_bounds = array<i64: 1, 1>}, {pipeline_mode = #tpu.pipeline_mode<synchronous>, transform_indices = @transform_3, window_bounds = array<i64: 1, 1>}, {pipeline_mode = #tpu.pipeline_mode<synchronous>, transform_indices = @transform_4, window_bounds = array<i64: 1, 1>}, {pipeline_mode = #tpu.pipeline_mode<synchronous>, transform_indices = @transform_5, window_bounds = array<i64: 1, 1>}]} {
    %c0 = arith.constant 0 : index
    %c0_0 = arith.constant 0 : index
    %0 = vector.load %arg1[%c0, %c0_0] : memref<8x32xf32, #tpu.memory_space<vmem>>, vector<8x32xf32>
    %c0_1 = arith.constant 0 : index
    %c0_2 = arith.constant 0 : index
    %1 = vector.load %arg2[%c0_1, %c0_2] : memref<8x32xf32, #tpu.memory_space<vmem>>, vector<8x32xf32>
    %2 = arith.subf %0, %1 : vector<8x32xf32>
    %3 = arith.mulf %2, %2 : vector<8x32xf32>
    %cst = arith.constant dense<0.000000e+00> : vector<8xf32>
    %4 = vector.multi_reduction <add>, %3, %cst [1] : vector<8x32xf32> to vector<8xf32>
    %5 = vector.shape_cast %4 : vector<8xf32> to vector<8x1xf32>
    %cst_3 = arith.constant dense<0.000000e+00> : vector<1xf32>
    %6 = vector.multi_reduction <add>, %5, %cst_3 [0] : vector<8x1xf32> to vector<1xf32>
    %7 = vector.shape_cast %6 : vector<1xf32> to vector<1x1xf32>
    %c0_4 = arith.constant 0 : index
    %c0_5 = arith.constant 0 : index
    %8 = vector.load %arg3[%c0_4, %c0_5] : memref<1x1xf32, #tpu.memory_space<vmem>>, vector<1x1xf32>
    tpu.vector_store %arg3[%c0_4, %c0_5], %7 {strides = array<i32>} : memref<1x1xf32, #tpu.memory_space<vmem>>, vector<1x1xf32>,
    %9 = arith.mulf %0, %1 : vector<8x32xf32>
    %cst_6 = arith.constant 0.000000e+00 : f32
    %10 = vector.broadcast %cst_6 : f32 to vector<8x32xf32>
    %11 = arith.cmpf ogt, %9, %10 : vector<8x32xf32>
    %cst_7 = arith.constant 0.000000e+00 : f32
    %12 = vector.broadcast %cst_7 : f32 to vector<8x32xf32>
    %13 = arith.cmpf oeq, %0, %12 : vector<8x32xf32>
    %cst_8 = arith.constant 0.000000e+00 : f32
    %14 = vector.broadcast %cst_8 : f32 to vector<8x32xf32>
    %15 = arith.cmpf oeq, %1, %14 : vector<8x32xf32>
    %16 = arith.andi %13, %15 : vector<8x32xi1>
    %17 = arith.ori %11, %16 : vector<8x32xi1>
    %18 = arith.extui %17 : vector<8x32xi1> to vector<8x32xi32>
    %19 = arith.sitofp %18 : vector<8x32xi32> to vector<8x32xf32>
    %cst_9 = arith.constant dense<0.000000e+00> : vector<8xf32>
    %20 = vector.multi_reduction <add>, %19, %cst_9 [1] : vector<8x32xf32> to vector<8xf32>
    %21 = vector.shape_cast %20 : vector<8xf32> to vector<8x1xf32>
    %cst_10 = arith.constant dense<0.000000e+00> : vector<1xf32>
    %22 = vector.multi_reduction <add>, %21, %cst_10 [0] : vector<8x1xf32> to vector<1xf32>
    %23 = vector.shape_cast %22 : vector<1xf32> to vector<1x1xf32>
    %c0_11 = arith.constant 0 : index
    %c0_12 = arith.constant 0 : index
    %24 = vector.load %arg4[%c0_11, %c0_12] : memref<1x1xf32, #tpu.memory_space<vmem>>, vector<1x1xf32>
    tpu.vector_store %arg4[%c0_11, %c0_12], %23 {strides = array<i32>} : memref<1x1xf32, #tpu.memory_space<vmem>>, vector<1x1xf32>,
    %cst_13 = arith.constant dense<0.000000e+00> : vector<32xf32>
    %25 = vector.multi_reduction <add>, %0, %cst_13 [0] : vector<8x32xf32> to vector<32xf32>
    %26 = vector.shape_cast %25 : vector<32xf32> to vector<1x32xf32>
    %cst_14 = arith.constant 1.250000e-01 : f32
    %27 = vector.broadcast %cst_14 : f32 to vector<1x32xf32>
    %28 = arith.mulf %26, %27 : vector<1x32xf32>
    %cst_15 = arith.constant dense<0.000000e+00> : vector<32xf32>
    %29 = vector.multi_reduction <add>, %1, %cst_15 [0] : vector<8x32xf32> to vector<32xf32>
    %30 = vector.shape_cast %29 : vector<32xf32> to vector<1x32xf32>
    %cst_16 = arith.constant 1.250000e-01 : f32
    %31 = vector.broadcast %cst_16 : f32 to vector<1x32xf32>
    %32 = arith.mulf %30, %31 : vector<1x32xf32>
    %33 = vector.broadcast %28 : vector<1x32xf32> to vector<8x32xf32>
    %34 = arith.subf %33, %0 : vector<8x32xf32>
    %35 = math.absf %34 : vector<8x32xf32>
    %cst_17 = arith.constant dense<0.000000e+00> : vector<8xf32>
    %36 = vector.multi_reduction <add>, %35, %cst_17 [1] : vector<8x32xf32> to vector<8xf32>
    %37 = vector.shape_cast %36 : vector<8xf32> to vector<8x1xf32>
    %cst_18 = arith.constant dense<0.000000e+00> : vector<1xf32>
    %38 = vector.multi_reduction <add>, %37, %cst_18 [0] : vector<8x1xf32> to vector<1xf32>
    %39 = vector.shape_cast %38 : vector<1xf32> to vector<1x1xf32>
    %c0_19 = arith.constant 0 : index
    %c0_20 = arith.constant 0 : index
    %40 = vector.load %arg5[%c0_19, %c0_20] : memref<1x1xf32, #tpu.memory_space<vmem>>, vector<1x1xf32>
    tpu.vector_store %arg5[%c0_19, %c0_20], %39 {strides = array<i32>} : memref<1x1xf32, #tpu.memory_space<vmem>>, vector<1x1xf32>,
    %41 = vector.broadcast %32 : vector<1x32xf32> to vector<8x32xf32>
    %42 = arith.subf %41, %1 : vector<8x32xf32>
    %43 = math.absf %42 : vector<8x32xf32>
    %cst_21 = arith.constant dense<0.000000e+00> : vector<8xf32>
    %44 = vector.multi_reduction <add>, %43, %cst_21 [1] : vector<8x32xf32> to vector<8xf32>
    %45 = vector.shape_cast %44 : vector<8xf32> to vector<8x1xf32>
    %cst_22 = arith.constant dense<0.000000e+00> : vector<1xf32>
    %46 = vector.multi_reduction <add>, %45, %cst_22 [0] : vector<8x1xf32> to vector<1xf32>
    %47 = vector.shape_cast %46 : vector<1xf32> to vector<1x1xf32>
    %c0_23 = arith.constant 0 : index
    %c0_24 = arith.constant 0 : index
    %48 = vector.load %arg6[%c0_23, %c0_24] : memref<1x1xf32, #tpu.memory_space<vmem>>, vector<1x1xf32>
    tpu.vector_store %arg6[%c0_23, %c0_24], %47 {strides = array<i32>} : memref<1x1xf32, #tpu.memory_space<vmem>>, vector<1x1xf32>,
    return
  }
  func.func @transform_0(%arg0: i32) -> (i32, i32) {
    %c0_i32 = arith.constant 0 : i32
    %c0_i32_0 = arith.constant 0 : i32
    %c0_i32_1 = arith.constant 0 : i32
    return %c0_i32, %c0_i32_0 : i32, i32
  }
  func.func @transform_1(%arg0: i32) -> (i32, i32) {
    %c0_i32 = arith.constant 0 : i32
    %c0_i32_0 = arith.constant 0 : i32
    %c0_i32_1 = arith.constant 0 : i32
    return %c0_i32, %c0_i32_0 : i32, i32
  }
  func.func @transform_2(%arg0: i32) -> (i32, i32) {
    %c0_i32 = arith.constant 0 : i32
    %c0_i32_0 = arith.constant 0 : i32
    %c0_i32_1 = arith.constant 0 : i32
    return %c0_i32, %c0_i32_0 : i32, i32
  }
  func.func @transform_3(%arg0: i32) -> (i32, i32) {
    %c0_i32 = arith.constant 0 : i32
    %c0_i32_0 = arith.constant 0 : i32
    %c0_i32_1 = arith.constant 0 : i32
    return %c0_i32, %c0_i32_0 : i32, i32
  }
  func.func @transform_4(%arg0: i32) -> (i32, i32) {
    %c0_i32 = arith.constant 0 : i32
    %c0_i32_0 = arith.constant 0 : i32
    %c0_i32_1 = arith.constant 0 : i32
    return %c0_i32, %c0_i32_0 : i32, i32
  }
  func.func @transform_5(%arg0: i32) -> (i32, i32) {
    %c0_i32 = arith.constant 0 : i32
    %c0_i32_0 = arith.constant 0 : i32
    %c0_i32_1 = arith.constant 0 : i32
    return %c0_i32, %c0_i32_0 : i32, i32
  }
}

</mosaic_0001>

<llo_original>
// kernel: tpu_custom_call.1
$region0: #{tpu_custom_call.1}
  #allocation0 [shape = 'u32[]', space=smem, size = 0x4, offset = 0x4, fixed_abs, tag = 'smem constant byte address 0x4 - core index']
  #allocation1 [shape = 'u32[144,128]{1,0:T(1,128)}', space=vmem, size = 0x12000, scoped, tag = 'internal scratch']
  %s0 = inlined_call_operand.hbm [shape: f32[8,32], index: 0, kind: input, shape index: {}]
  %s1 = inlined_call_operand.hbm [shape: f32[8,32], index: 1, kind: input, shape index: {}]
  %s2 = inlined_call_operand.hbm [shape: f32[1,1], index: 2, kind: output, shape index: {0}]
  %s3 = inlined_call_operand.hbm [shape: f32[1,1], index: 3, kind: output, shape index: {1}]
  %s4 = inlined_call_operand.hbm [shape: f32[1,1], index: 4, kind: output, shape index: {2}]
  %s5 = inlined_call_operand.hbm [shape: f32[1,1], index: 5, kind: output, shape index: {3}]
  %6 = xla_tuple %s2, %s3, %s4, %s5
  %s7 = sld [smem:[#allocation0]]
  $region50: #{tpu_custom_call.1} parent=0
    _
  %s9 = ssub.s32 1, %s7
  %s10 = scalar_select 0, %s9, %s7
  $region1: #{tpu_custom_call.1} parent=0
    #allocation2 [shape = 'u8[4096]{0}', space=vmem, size = 0x1000, scoped, tag = 'input window, operand 0, single buffered']
    #allocation3 [shape = 's32[1]{0}', space=sflag, size = 0x4, scoped, tag = 'scoped memory for tpu_custom_call.1']
    #allocation4 [shape = 's32[1]{0}', space=sflag, size = 0x4, scoped, tag = 'scoped memory for tpu_custom_call.1']
    #allocation5 [shape = 'u8[4096]{0}', space=vmem, size = 0x1000, scoped, tag = 'input window, operand 1, single buffered']
    #allocation6 [shape = 's32[1]{0}', space=sflag, size = 0x4, scoped, tag = 'scoped memory for tpu_custom_call.1']
    #allocation7 [shape = 'u8[512]{0}', space=vmem, size = 0x400, scoped, tag = 'output window, operand 0, single buffered']
    #allocation8 [shape = 'u8[512]{0}', space=vmem, size = 0x400, scoped, tag = 'output window, operand 1, single buffered']
    #allocation9 [shape = 's32[1]{0}', space=sflag, size = 0x4, scoped, tag = 'scoped memory for tpu_custom_call.1']
    #allocation10 [shape = 'u8[512]{0}', space=vmem, size = 0x400, scoped, tag = 'output window, operand 2, single buffered']
    #allocation11 [shape = 'u8[512]{0}', space=vmem, size = 0x400, scoped, tag = 'output window, operand 3, single buffered']
    #allocation12 [shape = 's32[1]{0}', space=sflag, size = 0x4, scoped, tag = 'scoped memory for tpu_custom_call.1']
    %11 = vsyncpa [#allocation3], 0
    %12 = vsyncpa [#allocation6], 0
    %13 = vsyncpa [#allocation4], 0
    %14 = vsyncpa [#allocation9], 0
    %15 = vsyncpa [#allocation12], 0
    // Predicated region
    $region2: #{tpu_custom_call.1} parent=1 // pred_check
      _
    $region3: #{tpu_custom_call.1} parent=1 // pred_check_branch
      %17 = sbr.rel (0) target = $region5
    $region4: #{tpu_custom_call.1} parent=1 // pred_region
      %s19 = ssub.s32 128, 128
      %20 = vsyncadd [#allocation3], %s19
      %s22 = sshll.u32 [#allocation2], 4
      %s23 = int_to_ptr.vmem [resolvable:$true] %s22
      %25 = dma.hbm_to_vmem [thread:$0]  %s0, 128, %s23, [#allocation3]
    $region5: #{tpu_custom_call.1} parent=1 // pred_fallthru
      _
    // Predicated region
    $region6: #{tpu_custom_call.1} parent=1 // pred_check
      _
    $region7: #{tpu_custom_call.1} parent=1 // pred_check_branch
      %27 = sbr.rel (0) target = $region9
    $region8: #{tpu_custom_call.1} parent=1 // pred_region
      %s29 = ssub.s32 128, 128
      %30 = vsyncadd [#allocation6], %s29
      %s32 = sshll.u32 [#allocation5], 4
      %s33 = int_to_ptr.vmem [resolvable:$true] %s32
      %35 = dma.hbm_to_vmem [thread:$0]  %s1, 128, %s33, [#allocation6]
    $region9: #{tpu_custom_call.1} parent=1 // pred_fallthru
      _
    // Predicated region
    $region10: #{tpu_custom_call.1} parent=1 // pred_check
      _
    $region11: #{tpu_custom_call.1} parent=1 // pred_check_branch
      %37 = sbr.rel (0) target = $region13
    $region12: #{tpu_custom_call.1} parent=1 // pred_region
      %38 = dma.done [#allocation3], 128
    $region13: #{tpu_custom_call.1} parent=1 // pred_fallthru
      _
    // Predicated region
    $region14: #{tpu_custom_call.1} parent=1 // pred_check
      _
    $region15: #{tpu_custom_call.1} parent=1 // pred_check_branch
      %40 = sbr.rel (0) target = $region17
    $region16: #{tpu_custom_call.1} parent=1 // pred_region
      %41 = dma.done [#allocation6], 128
    $region17: #{tpu_custom_call.1} parent=1 // pred_fallthru
      _
    %v42 = vld [vmem:[#allocation2] sm:$0xff]
    %v43 = vld [vmem:[#allocation5] sm:$0xff]
    %v44 = vsub.f32 %v42, %v43
    %v45 = vmul.f32 %v44, %v44
    %vm46 = vcmask 261120
    %v47 = vsel %vm46, %v45, 0.0
    %48 = vadd.xlane.f32.xlu0 %v47
    %v49 = vpop.xlane.xlu0 %48
    %v50 = vrot.slane %v49, 4
    %v51 = vadd.f32 %v49, %v50
    %v52 = vrot.slane %v51, 2
    %v53 = vadd.f32 %v51, %v52
    %v54 = vrot.slane %v53, 1
    %v55 = vadd.f32 %v53, %v54
    %vm56 = vcmask 0
    %57 = vst.msk [vmem:[#allocation7] sm:$0x1] %vm56, %v55
    %v58 = vmul.f32 %v42, %v43
    %vm59 = vcmp.gt.f32.partialorder %v58, 0.0
    %vm60 = vcmp.eq.f32.partialorder %v42, 0.0
    %vm61 = vcmp.eq.f32.partialorder %v43, 0.0
    %vm62 = vmand %vm60, %vm61
    %vm63 = vmor %vm59, %vm62
    %v64 = vsel %vm63, 1, 0
    %v65 = vcvt.s32.f32 %v64
    %v66 = vsel %vm46, %v65, 0.0
    %67 = vadd.xlane.f32.xlu0 %v66
    %v68 = vpop.xlane.xlu0 %67
    %v69 = vrot.slane %v68, 4
    %v70 = vadd.f32 %v68, %v69
    %v71 = vrot.slane %v70, 2
    %v72 = vadd.f32 %v70, %v71
    %v73 = vrot.slane %v72, 1
    %v74 = vadd.f32 %v72, %v73
    %75 = vst.msk [vmem:[#allocation8] sm:$0x1] %vm56, %v74
    %v76 = vsel %vm46, %v42, 0.0
    %v77 = vrot.slane %v76, 4
    %v78 = vadd.f32 %v76, %v77
    %v79 = vrot.slane %v78, 2
    %v80 = vadd.f32 %v78, %v79
    %v81 = vrot.slane %v80, 1
    %v82 = vadd.f32 %v80, %v81
    %v83 = vmul.f32 %v82, 0.125
    %v84 = vsel %vm46, %v43, 0.0
    %v85 = vrot.slane %v84, 4
    %v86 = vadd.f32 %v84, %v85
    %v87 = vrot.slane %v86, 2
    %v88 = vadd.f32 %v86, %v87
    %v89 = vrot.slane %v88, 1
    %v90 = vadd.f32 %v88, %v89
    %v91 = vmul.f32 %v90, 0.125
    %v92 = vsub.f32 %v83, %v42
    %v93 = vand.u32 2147483647, %v92
    %v94 = vsel %vm46, %v93, 0.0
    %95 = vadd.xlane.f32.xlu0 %v94
    %v96 = vpop.xlane.xlu0 %95
    %v97 = vrot.slane %v96, 4
    %v98 = vadd.f32 %v96, %v97
    %v99 = vrot.slane %v98, 2
    %v100 = vadd.f32 %v98, %v99
    %v101 = vrot.slane %v100, 1
    %v102 = vadd.f32 %v100, %v101
    %103 = vst.msk [vmem:[#allocation10] sm:$0x1] %vm56, %v102
    %v104 = vsub.f32 %v91, %v43
    %v105 = vand.u32 2147483647, %v104
    %v106 = vsel %vm46, %v105, 0.0
    %107 = vadd.xlane.f32.xlu0 %v106
    %v108 = vpop.xlane.xlu0 %107
    %v109 = vrot.slane %v108, 4
    %v110 = vadd.f32 %v108, %v109
    %v111 = vrot.slane %v110, 2
    %v112 = vadd.f32 %v110, %v111
    %v113 = vrot.slane %v112, 1
    %v114 = vadd.f32 %v112, %v113
    %115 = vst.msk [vmem:[#allocation11] sm:$0x1] %vm56, %v114
    // Predicated region
    $region18: #{tpu_custom_call.1} parent=1 // pred_check
      _
    $region19: #{tpu_custom_call.1} parent=1 // pred_check_branch
      %117 = sbr.rel (0) target = $region21
    $region20: #{tpu_custom_call.1} parent=1 // pred_region
      %s119 = ssub.s32 16, 16
      %120 = vsyncadd [#allocation4], %s119
      %s122 = sshll.u32 [#allocation7], 4
      %s123 = int_to_ptr.vmem [resolvable:$true] %s122
      %125 = dma.vmem_to_hbm [thread:$0]  %s123, 16, %s2, [#allocation4]
    $region21: #{tpu_custom_call.1} parent=1 // pred_fallthru
      _
    // Predicated region
    $region22: #{tpu_custom_call.1} parent=1 // pred_check
      _
    $region23: #{tpu_custom_call.1} parent=1 // pred_check_branch
      %127 = sbr.rel (0) target = $region25
    $region24: #{tpu_custom_call.1} parent=1 // pred_region
      %s129 = ssub.s32 16, 16
      %130 = vsyncadd [#allocation9], %s129
      %s132 = sshll.u32 [#allocation8], 4
      %s133 = int_to_ptr.vmem [resolvable:$true] %s132
      %135 = dma.vmem_to_hbm [thread:$0]  %s133, 16, %s3, [#allocation9]
    $region25: #{tpu_custom_call.1} parent=1 // pred_fallthru
      _
    // Predicated region
    $region26: #{tpu_custom_call.1} parent=1 // pred_check
      _
    $region27: #{tpu_custom_call.1} parent=1 // pred_check_branch
      %137 = sbr.rel (0) target = $region29
    $region28: #{tpu_custom_call.1} parent=1 // pred_region
      %s139 = ssub.s32 16, 16
      %140 = vsyncadd [#allocation9], %s139
      %s142 = sshll.u32 [#allocation10], 4
      %s143 = int_to_ptr.vmem [resolvable:$true] %s142
      %145 = dma.vmem_to_hbm [thread:$0]  %s143, 16, %s4, [#allocation9]
    $region29: #{tpu_custom_call.1} parent=1 // pred_fallthru
      _
    // Predicated region
    $region30: #{tpu_custom_call.1} parent=1 // pred_check
      _
    $region31: #{tpu_custom_call.1} parent=1 // pred_check_branch
      %147 = sbr.rel (0) target = $region33
    $region32: #{tpu_custom_call.1} parent=1 // pred_region
      %s149 = ssub.s32 16, 16
      %150 = vsyncadd [#allocation12], %s149
      %s152 = sshll.u32 [#allocation11], 4
      %s153 = int_to_ptr.vmem [resolvable:$true] %s152
      %155 = dma.vmem_to_hbm [thread:$0]  %s153, 16, %s5, [#allocation12]
    $region33: #{tpu_custom_call.1} parent=1 // pred_fallthru
      _
    // Predicated region
    $region34: #{tpu_custom_call.1} parent=1 // pred_check
      _
    $region35: #{tpu_custom_call.1} parent=1 // pred_check_branch
      %157 = sbr.rel (0) target = $region37
    $region36: #{tpu_custom_call.1} parent=1 // pred_region
      %158 = dma.done [#allocation4], 16
    $region37: #{tpu_custom_call.1} parent=1 // pred_fallthru
      _
    // Predicated region
    $region38: #{tpu_custom_call.1} parent=1 // pred_check
      _
    $region39: #{tpu_custom_call.1} parent=1 // pred_check_branch
      %160 = sbr.rel (0) target = $region41
    $region40: #{tpu_custom_call.1} parent=1 // pred_region
      %161 = dma.done [#allocation9], 16
    $region41: #{tpu_custom_call.1} parent=1 // pred_fallthru
      _
    // Predicated region
    $region42: #{tpu_custom_call.1} parent=1 // pred_check
      _
    $region43: #{tpu_custom_call.1} parent=1 // pred_check_branch
      %163 = sbr.rel (0) target = $region45
    $region44: #{tpu_custom_call.1} parent=1 // pred_region
      %164 = dma.done [#allocation9], 16
    $region45: #{tpu_custom_call.1} parent=1 // pred_fallthru
      _
    // Predicated region
    $region46: #{tpu_custom_call.1} parent=1 // pred_check
      _
    $region47: #{tpu_custom_call.1} parent=1 // pred_check_branch
      %166 = sbr.rel (0) target = $region49
    $region48: #{tpu_custom_call.1} parent=1 // pred_region
      %167 = dma.done [#allocation12], 16
    $region49: #{tpu_custom_call.1} parent=1 // pred_fallthru
      _
    %168 = vsyncpa [#allocation3], 1
    %169 = vsyncpa [#allocation6], 1
    %170 = vsyncpa [#allocation4], 1
    %171 = vsyncpa [#allocation9], 1
    %172 = vsyncpa [#allocation12], 1

</llo_original>
